<compile_context>
chip_gen: v7x
topology: tpu7x:2x2x1
jax: 0.10.0
libtpu: 0.0.40
codegen_flags: <defaults>
</compile_context>

<pallas_src>
import math
import functools

import jax
import jax.numpy as jnp
from jax import lax
from jax.experimental import pallas as pl
from jax.experimental.pallas import tpu as pltpu

LOG_2PI = math.log(2.0 * math.pi)
NUM_SAMPLES = 7


def l2_normalize(x, eps=1e-12):
    sq = jnp.sum(x * x, axis=-1, keepdims=True)
    return x * lax.rsqrt(jnp.maximum(sq, eps))


def sample_gaussian_tensors(mean, logsigma, num_samples, key):
    # Sample-major (num_samples, B, D).
    eps = jax.random.normal(key, (num_samples,) + mean.shape, dtype=jnp.float32)
    return eps * jnp.exp(logsigma)[None] + mean[None]


def _build_lhs(qm_ref, qls_ref):
    """Query-side MXU operand + per-row constant, in f32.

    lhs        = [exp(-logsigma) | qn * exp(-logsigma)]     (bq, 2D)
    neg_half_c = -0.5 * sum_d qn^2 * exp(-logsigma)          (bq, 1)
    (the -0.5 on the squared-moment half is folded into smom_t by the wrapper).
    """
    qm = qm_ref[...].astype(jnp.float32)
    qls = qls_ref[...].astype(jnp.float32)
    inv_sigmas = jnp.exp(-qls)                                   # EUP
    sq = jnp.sum(qm * qm, axis=-1, keepdims=True)
    qn = qm * lax.rsqrt(jnp.maximum(sq, 1e-12))
    qnsig = qn * inv_sigmas
    lhs = jnp.concatenate([inv_sigmas, qnsig], axis=-1)          # (bq, 2D)
    neg_half_c = -0.5 * jnp.sum(qn * qnsig, axis=-1, keepdims=True)
    return lhs, neg_half_c


def _colmax_kernel(qm_ref, qls_ref, smomt_ref, *out_refs,
                   recall, matmul_dtype, block_q):
    """Pass 1: per-column max of loc (+ per-column argmax row for recall).

    grid = (nt [parallel], nq [arbitrary]); the (1, bt) output blocks stay
    resident across the inner q axis and are max-accumulated in place.
    """
    q = pl.program_id(1)
    colmax_ref = out_refs[0]

    lhs, neg_half_c = _build_lhs(qm_ref, qls_ref)
    loc = jnp.dot(lhs.astype(matmul_dtype), smomt_ref[...],
                  preferred_element_type=jnp.float32) + neg_half_c   # (bq, bt) f32
    tile_max = jnp.max(loc, axis=0, keepdims=True)                   # (1, bt)

    @pl.when(q == 0)
    def _():
        colmax_ref[...] = jnp.full_like(colmax_ref, -jnp.inf)
        if recall:
            out_refs[1][...] = jnp.zeros_like(out_refs[1])

    prev_max = colmax_ref[...]
    if recall:
        arg_ref = out_refs[1]
        bq, bt = loc.shape
        # Tile-bounded iota only (never B^2): first-occurrence argmax in tile.
        rows = q * block_q + lax.broadcasted_iota(jnp.int32, (bq, bt), 0)
        tile_arg = jnp.min(jnp.where(loc >= tile_max, rows, jnp.int32(2 ** 30)),
                           axis=0, keepdims=True)
        # Strict ">" keeps the earlier q tile on ties -> global first argmax.
        arg_ref[...] = jnp.where(tile_max > prev_max, tile_arg, arg_ref[...])
    colmax_ref[...] = jnp.maximum(prev_max, tile_max)


def _rowlse_kernel(qm_ref, qls_ref, smomt_ref, colmax_ref, lse_ref,
                   lhs_ref, nhc_ref, run_max_ref, run_sum_ref,
                   *, temperature, matmul_dtype):
    """Pass 2: online row-logsumexp of (loc - colmax) / T.

    grid = (nq [parallel], nt [arbitrary, innermost]); the query-side operand
    is built once per q tile (t == 0) into VMEM scratch.  Softmax math stays
    in f32; only MXU operands are in matmul_dtype.
    """
    t = pl.program_id(1)

    @pl.when(t == 0)
    def _():
        lhs, neg_half_c = _build_lhs(qm_ref, qls_ref)
        lhs_ref[...] = lhs.astype(matmul_dtype)
        nhc_ref[...] = neg_half_c
        run_max_ref[...] = jnp.full_like(run_max_ref, -jnp.inf)
        run_sum_ref[...] = jnp.zeros_like(run_sum_ref)

    loc = jnp.dot(lhs_ref[...], smomt_ref[...],
                  preferred_element_type=jnp.float32) + nhc_ref[...]   # (bq, bt)
    logits = (loc - colmax_ref[...]) * (1.0 / temperature)             # f32
    tile_max = jnp.max(logits, axis=1, keepdims=True)                  # (bq, 1)
    new_max = jnp.maximum(run_max_ref[...], tile_max)
    alpha = jnp.exp(run_max_ref[...] - new_max)
    run_sum_ref[...] = alpha * run_sum_ref[...] + jnp.sum(
        jnp.exp(logits - new_max), axis=1, keepdims=True)
    run_max_ref[...] = new_max

    @pl.when(t == pl.num_programs(1) - 1)
    def _():
        lse_ref[...] = run_max_ref[...] + jnp.log(run_sum_ref[...])


def _pick_block(size, want):
    if size < 128 or size % 128 != 0:
        return size                      # tiny / awkward sizes: one full tile
    blk = min(want, size)
    blk -= blk % 128
    while size % blk != 0:
        blk -= 128
    return blk


def mpc_retrieval_loss(query_mean, query_logsigma, query_z,
                       target_mean, target_logsigma, target_z,
                       *, temperature, key, reduction='mean', recall=False,
                       matmul_dtype=jnp.float32, block_q=512, block_t=512):
    # query_z + the Gaussian norm constant broadcast along the target/column
    # axis in the reference, so the per-column max subtraction cancels them
    # exactly for the loss, the LSE and the recall argmax -> dropped entirely.
    # target_z is unused by the reference forward (kept for signature parity).
    # matmul_dtype=jnp.bfloat16 is the recommended production setting (f32
    # accumulation); kept f32 here so the tight check below holds at T=0.1.
    del query_z, target_z
    assert reduction == 'mean'  # TODO(synk): 'sum'/'none' reductions not wired up.
    B, D = query_mean.shape

    # ---- wrapper glue (fuses under jit) -------------------------------------
    # Normalize targets, draw the 7 Gaussian samples and reduce them to first/
    # second moments immediately; the (K, B, D) tensor is never DMA'd into the
    # kernel.  -0.5 folded into the squared-moment half, pre-transposed to
    # (2D, B) and pre-cast to matmul_dtype -> plain (M,K)x(K,N) MXU matmuls.
    tmean = l2_normalize(target_mean.astype(jnp.float32))
    tls = target_logsigma.astype(jnp.float32)
    samples = sample_gaussian_tensors(tmean, tls, NUM_SAMPLES, key)   # (K, B, D)
    s_mean = jnp.mean(samples, axis=0)                                # (B, D)
    s_sqmean = jnp.mean(samples * samples, axis=0)                    # (B, D)
    smom_t = jnp.concatenate([-0.5 * s_sqmean, s_mean], axis=-1).T    # (2D, B)
    smom_t = smom_t.astype(matmul_dtype)

    # Per-row (diagonal) raw score in f32, O(B*D): no B^2 diag extraction.
    qm32 = query_mean.astype(jnp.float32)
    qls32 = query_logsigma.astype(jnp.float32)
    inv_sigmas = jnp.exp(-qls32)
    qn = l2_normalize(qm32)
    qnsig = qn * inv_sigmas
    diag_raw = (-0.5 * jnp.sum(inv_sigmas * s_sqmean, axis=-1)
                + jnp.sum(qnsig * s_mean, axis=-1)
                - 0.5 * jnp.sum(qn * qnsig, axis=-1))                 # (B,)

    bq = _pick_block(B, block_q)
    bt = _pick_block(B, block_t)
    nq, nt = B // bq, B // bt

    # ---- pass 1: per-column max (+ argmax for recall) -----------------------
    p1_out_shape = [jax.ShapeDtypeStruct((1, B), jnp.float32)]
    p1_out_specs = [pl.BlockSpec((1, bt), lambda t, q: (0, t))]
    if recall:
        p1_out_shape.append(jax.ShapeDtypeStruct((1, B), jnp.int32))
        p1_out_specs.append(pl.BlockSpec((1, bt), lambda t, q: (0, t)))
    p1 = pl.pallas_call(
        functools.partial(_colmax_kernel, recall=bool(recall),
                          matmul_dtype=matmul_dtype, block_q=bq),
        out_shape=tuple(p1_out_shape),
        grid=(nt, nq),
        in_specs=[
            pl.BlockSpec((bq, D), lambda t, q: (q, 0)),         # query_mean
            pl.BlockSpec((bq, D), lambda t, q: (q, 0)),         # query_logsigma
            pl.BlockSpec((2 * D, bt), lambda t, q: (0, t)),     # [-0.5*sqmean | mean].T
        ],
        out_specs=tuple(p1_out_specs),
        compiler_params=pltpu.CompilerParams(
            dimension_semantics=("parallel", "arbitrary")),
    )(query_mean, query_logsigma, smom_t)
    colmax = p1[0]                                               # (1, B) f32

    # ---- pass 2: online row-logsumexp ---------------------------------------
    lse = pl.pallas_call(
        functools.partial(_rowlse_kernel, temperature=float(temperature),
                          matmul_dtype=matmul_dtype),
        out_shape=jax.ShapeDtypeStruct((B, 1), jnp.float32),
        grid=(nq, nt),
        in_specs=[
            pl.BlockSpec((bq, D), lambda q, t: (q, 0)),         # query_mean
            pl.BlockSpec((bq, D), lambda q, t: (q, 0)),         # query_logsigma
            pl.BlockSpec((2 * D, bt), lambda q, t: (0, t)),     # smom_t (streamed)
            pl.BlockSpec((1, bt), lambda q, t: (0, t)),         # colmax (streamed)
        ],
        out_specs=pl.BlockSpec((bq, 1), lambda q, t: (q, 0)),
        scratch_shapes=[
            pltpu.VMEM((bq, 2 * D), matmul_dtype),   # cached query-side operand
            pltpu.VMEM((bq, 1), jnp.float32),        # -0.5 * c
            pltpu.VMEM((bq, 1), jnp.float32),        # running max
            pltpu.VMEM((bq, 1), jnp.float32),        # running sum
        ],
        compiler_params=pltpu.CompilerParams(
            dimension_semantics=("parallel", "arbitrary")),
    )(query_mean, query_logsigma, smom_t, colmax)

    # ---- O(B) epilogue (fuses in XLA) ----------------------------------------
    colmax_row = colmax[0]                                       # (B,)
    target_logit = (diag_raw - colmax_row) * (1.0 / temperature)
    loss = jnp.mean(lse[:, 0] - target_logit)
    if recall:
        argmax = p1[1][0]                                        # (B,) int32
        hits = jnp.sum((argmax == jnp.arange(B, dtype=jnp.int32)).astype(jnp.int32))
        return loss, hits
    return loss


def reference_loss_and_scores(query_mean, query_logsigma, query_z,
                              target_samples_kbd, temperature):
    # Pure-JAX transcription of the PyTorch forward (for the correctness check).
    qn = l2_normalize(query_mean)
    ts = jnp.transpose(target_samples_kbd, (1, 0, 2))            # (B, K, D)
    inv_sigmas = jnp.exp(-query_logsigma)
    diff = ts[None, :, :, :] - qn[:, None, None, :]
    loc = -0.5 * jnp.mean(
        jnp.sum(diff ** 2 * inv_sigmas[:, None, None, :], axis=-1), axis=-1)
    D = query_mean.shape[-1]
    norm_constant = -D / 2 * math.log(2 * math.pi) - 0.5 * jnp.sum(query_logsigma, axis=-1)
    scores = query_z + norm_constant + loc
    scores = scores - jnp.max(scores, axis=0, keepdims=True)
    logits = scores / temperature
    B = query_mean.shape[0]
    lse = jax.scipy.special.logsumexp(logits, axis=1)
    loss = jnp.mean(lse - logits[jnp.arange(B), jnp.arange(B)])
    return loss, scores


if __name__ == "__main__":
    temperature = 0.1  # deterministic stand-in for config.temperature

    def run_case(B, D, block, seed):
        key = jax.random.PRNGKey(seed)
        kq, kql, kqz, ktm, ktl, ktz, ksamp = jax.random.split(key, 7)
        query_mean = jax.random.normal(kq, (B, D), jnp.float32)
        query_logsigma = 0.1 * jax.random.normal(kql, (B, D), jnp.float32)
        query_z = 0.1 * jax.random.normal(kqz, (B,), jnp.float32)
        target_mean = jax.random.normal(ktm, (B, D), jnp.float32)
        target_logsigma = 0.1 * jax.random.normal(ktl, (B, D), jnp.float32) - 1.0
        target_z = 0.1 * jax.random.normal(ktz, (B,), jnp.float32)

        # recall=True path (loss + hit count, no B^2 HBM writes).
        fn = jax.jit(functools.partial(
            mpc_retrieval_loss, temperature=temperature, key=ksamp,
            recall=True, block_q=block, block_t=block))
        loss, hits = jax.block_until_ready(
            fn(query_mean, query_logsigma, query_z,
               target_mean, target_logsigma, target_z))

        # Pure-JAX reference using the exact same target samples.
        ts_ref = sample_gaussian_tensors(l2_normalize(target_mean),
                                         target_logsigma, NUM_SAMPLES, ksamp)
        ref_loss, ref_scores = reference_loss_and_scores(
            query_mean, query_logsigma, query_z, ts_ref, temperature)
        ref_hits = jnp.sum(jnp.argmax(ref_scores, axis=0) == jnp.arange(B))

        assert jnp.allclose(loss, ref_loss, rtol=5e-3, atol=5e-3), (B, loss, ref_loss)
        assert int(hits) == int(ref_hits), (B, int(hits), int(ref_hits))

        # recall=False path (loss only).
        fn2 = jax.jit(functools.partial(
            mpc_retrieval_loss, temperature=temperature, key=ksamp,
            recall=False, block_q=block, block_t=block))
        loss2 = jax.block_until_ready(
            fn2(query_mean, query_logsigma, query_z,
                target_mean, target_logsigma, target_z))
        assert jnp.allclose(loss2, ref_loss, rtol=5e-3, atol=5e-3), (B, loss2, ref_loss)

    run_case(B=8, D=128, block=512, seed=0)     # tiny single-tile fallback path
    run_case(B=256, D=128, block=128, seed=1)   # 2x2 tiled path (accum + online LSE)
    print("KERNEL_OK")
</pallas_src>

<mosaic_0001>
module attributes {stable_mosaic.version = 11 : i64} {
  func.func @_rowlse_kernel(%arg0: i32, %arg1: i32, %arg2: memref<8x128xf32, #tpu.memory_space<vmem>>, %arg3: memref<8x128xf32, #tpu.memory_space<vmem>>, %arg4: memref<256x8xf32, #tpu.memory_space<vmem>>, %arg5: memref<1x8xf32, #tpu.memory_space<vmem>>, %arg6: memref<8x1xf32, #tpu.memory_space<vmem>>, %arg7: memref<8x256xf32, #tpu.memory_space<vmem>>, %arg8: memref<8x1xf32, #tpu.memory_space<vmem>>, %arg9: memref<8x1xf32, #tpu.memory_space<vmem>>, %arg10: memref<8x1xf32, #tpu.memory_space<vmem>>) attributes {dimension_semantics = [#tpu.dimension_semantics<parallel>, #tpu.dimension_semantics<arbitrary>], iteration_bounds = array<i64: 1, 1>, scalar_prefetch = 0 : i64, scratch_operands = 4 : i64, tpu.core_type = #tpu.core_type<tc>, window_params = [{transform_indices = @transform_0, window_bounds = array<i64: 8, 128>}, {transform_indices = @transform_1, window_bounds = array<i64: 8, 128>}, {transform_indices = @transform_2, window_bounds = array<i64: 256, 8>}, {transform_indices = @transform_3, window_bounds = array<i64: 1, 8>}, {transform_indices = @transform_4, window_bounds = array<i64: 8, 1>}]} {
    %c0_i32 = arith.constant 0 : i32
    %0 = arith.cmpi eq, %arg1, %c0_i32 : i32
    %1 = arith.extui %0 : i1 to i32
    %c0_i32_0 = arith.constant 0 : i32
    %2 = arith.cmpi ne, %1, %c0_i32_0 : i32
    scf.if %2 {
      %c0_23 = arith.constant 0 : index
      %c0_24 = arith.constant 0 : index
      %34 = vector.load %arg2[%c0_23, %c0_24] : memref<8x128xf32, #tpu.memory_space<vmem>>, vector<8x128xf32>
      %c0_25 = arith.constant 0 : index
      %c0_26 = arith.constant 0 : index
      %35 = vector.load %arg3[%c0_25, %c0_26] : memref<8x128xf32, #tpu.memory_space<vmem>>, vector<8x128xf32>
      %cst_27 = arith.constant 0.000000e+00 : f32
      %36 = vector.broadcast %cst_27 : f32 to vector<8x128xf32>
      %37 = arith.subf %36, %35 : vector<8x128xf32>
      %38 = math.exp %37 : vector<8x128xf32>
      %39 = arith.mulf %34, %34 : vector<8x128xf32>
      %cst_28 = arith.constant dense<0.000000e+00> : vector<8xf32>
      %40 = vector.multi_reduction <add>, %39, %cst_28 [1] : vector<8x128xf32> to vector<8xf32>
      %41 = vector.shape_cast %40 : vector<8xf32> to vector<8x1xf32>
      %cst_29 = arith.constant 9.99999996E-13 : f32
      %42 = vector.broadcast %cst_29 : f32 to vector<8x1xf32>
      %43 = arith.maximumf %41, %42 : vector<8x1xf32>
      %44 = math.rsqrt %43 : vector<8x1xf32>
      %45 = vector.broadcast %44 : vector<8x1xf32> to vector<8x128xf32>
      %46 = arith.mulf %34, %45 : vector<8x128xf32>
      %47 = arith.mulf %46, %38 : vector<8x128xf32>
      %48 = tpu.concatenate %38, %47 in 1 : vector<8x128xf32>, vector<8x128xf32> -> vector<8x256xf32>
      %49 = arith.mulf %46, %47 : vector<8x128xf32>
      %cst_30 = arith.constant dense<0.000000e+00> : vector<8xf32>
      %50 = vector.multi_reduction <add>, %49, %cst_30 [1] : vector<8x128xf32> to vector<8xf32>
      %51 = vector.shape_cast %50 : vector<8xf32> to vector<8x1xf32>
      %cst_31 = arith.constant -5.000000e-01 : f32
      %52 = vector.broadcast %cst_31 : f32 to vector<8x1xf32>
      %53 = arith.mulf %52, %51 : vector<8x1xf32>
      %c0_32 = arith.constant 0 : index
      %c0_33 = arith.constant 0 : index
      %54 = vector.load %arg7[%c0_32, %c0_33] : memref<8x256xf32, #tpu.memory_space<vmem>>, vector<8x256xf32>
      tpu.vector_store %arg7[%c0_32, %c0_33], %48 {strides = array<i32>} : memref<8x256xf32, #tpu.memory_space<vmem>>, vector<8x256xf32>,
      %c0_34 = arith.constant 0 : index
      %c0_35 = arith.constant 0 : index
      %55 = vector.load %arg8[%c0_34, %c0_35] : memref<8x1xf32, #tpu.memory_space<vmem>>, vector<8x1xf32>
      tpu.vector_store %arg8[%c0_34, %c0_35], %53 {strides = array<i32>} : memref<8x1xf32, #tpu.memory_space<vmem>>, vector<8x1xf32>,
      %cst_36 = arith.constant 0xFF800000 : f32
      %56 = vector.broadcast %cst_36 : f32 to vector<8x1xf32>
      %c0_37 = arith.constant 0 : index
      %c0_38 = arith.constant 0 : index
      %57 = vector.load %arg9[%c0_37, %c0_38] : memref<8x1xf32, #tpu.memory_space<vmem>>, vector<8x1xf32>
      tpu.vector_store %arg9[%c0_37, %c0_38], %56 {strides = array<i32>} : memref<8x1xf32, #tpu.memory_space<vmem>>, vector<8x1xf32>,
      %cst_39 = arith.constant 0.000000e+00 : f32
      %58 = vector.broadcast %cst_39 : f32 to vector<8x1xf32>
      %c0_40 = arith.constant 0 : index
      %c0_41 = arith.constant 0 : index
      %59 = vector.load %arg10[%c0_40, %c0_41] : memref<8x1xf32, #tpu.memory_space<vmem>>, vector<8x1xf32>
      tpu.vector_store %arg10[%c0_40, %c0_41], %58 {strides = array<i32>} : memref<8x1xf32, #tpu.memory_space<vmem>>, vector<8x1xf32>,
    } else {
    }
    %c0 = arith.constant 0 : index
    %c0_1 = arith.constant 0 : index
    %3 = vector.load %arg7[%c0, %c0_1] : memref<8x256xf32, #tpu.memory_space<vmem>>, vector<8x256xf32>
    %c0_2 = arith.constant 0 : index
    %c0_3 = arith.constant 0 : index
    %4 = vector.load %arg4[%c0_2, %c0_3] : memref<256x8xf32, #tpu.memory_space<vmem>>, vector<256x8xf32>
    %cst = arith.constant dense<0.000000e+00> : vector<8x8xf32>
    %5 = tpu.matmul %3, %4, %cst {dimension_numbers = #tpu.dot_dimension_numbers<[1], [0], [0], [1], [0, 0, 1, 1], [], []>} : vector<8x256xf32>, vector<256x8xf32>, vector<8x8xf32> -> vector<8x8xf32>
    %c0_4 = arith.constant 0 : index
    %c0_5 = arith.constant 0 : index
    %6 = vector.load %arg8[%c0_4, %c0_5] : memref<8x1xf32, #tpu.memory_space<vmem>>, vector<8x1xf32>
    %7 = vector.broadcast %6 : vector<8x1xf32> to vector<8x8xf32>
    %8 = arith.addf %5, %7 : vector<8x8xf32>
    %c0_6 = arith.constant 0 : index
    %c0_7 = arith.constant 0 : index
    %9 = vector.load %arg5[%c0_6, %c0_7] : memref<1x8xf32, #tpu.memory_space<vmem>>, vector<1x8xf32>
    %10 = vector.broadcast %9 : vector<1x8xf32> to vector<8x8xf32>
    %11 = arith.subf %8, %10 : vector<8x8xf32>
    %cst_8 = arith.constant 1.000000e+01 : f32
    %12 = vector.broadcast %cst_8 : f32 to vector<8x8xf32>
    %13 = arith.mulf %11, %12 : vector<8x8xf32>
    %cst_9 = arith.constant dense<0xFF800000> : vector<8xf32>
    %14 = vector.multi_reduction <maximumf>, %13, %cst_9 [1] : vector<8x8xf32> to vector<8xf32>
    %15 = vector.shape_cast %14 : vector<8xf32> to vector<8x1xf32>
    %c0_10 = arith.constant 0 : index
    %c0_11 = arith.constant 0 : index
    %16 = vector.load %arg9[%c0_10, %c0_11] : memref<8x1xf32, #tpu.memory_space<vmem>>, vector<8x1xf32>
    %17 = arith.maximumf %16, %15 : vector<8x1xf32>
    %c0_12 = arith.constant 0 : index
    %c0_13 = arith.constant 0 : index
    %18 = vector.load %arg9[%c0_12, %c0_13] : memref<8x1xf32, #tpu.memory_space<vmem>>, vector<8x1xf32>
    %19 = arith.subf %18, %17 : vector<8x1xf32>
    %20 = math.exp %19 : vector<8x1xf32>
    %c0_14 = arith.constant 0 : index
    %c0_15 = arith.constant 0 : index
    %21 = vector.load %arg10[%c0_14, %c0_15] : memref<8x1xf32, #tpu.memory_space<vmem>>, vector<8x1xf32>
    %22 = arith.mulf %20, %21 : vector<8x1xf32>
    %23 = vector.broadcast %17 : vector<8x1xf32> to vector<8x8xf32>
    %24 = arith.subf %13, %23 : vector<8x8xf32>
    %25 = math.exp %24 : vector<8x8xf32>
    %cst_16 = arith.constant dense<0.000000e+00> : vector<8xf32>
    %26 = vector.multi_reduction <add>, %25, %cst_16 [1] : vector<8x8xf32> to vector<8xf32>
    %27 = vector.shape_cast %26 : vector<8xf32> to vector<8x1xf32>
    %28 = arith.addf %22, %27 : vector<8x1xf32>
    %c0_17 = arith.constant 0 : index
    %c0_18 = arith.constant 0 : index
    %29 = vector.load %arg10[%c0_17, %c0_18] : memref<8x1xf32, #tpu.memory_space<vmem>>, vector<8x1xf32>
    tpu.vector_store %arg10[%c0_17, %c0_18], %28 {strides = array<i32>} : memref<8x1xf32, #tpu.memory_space<vmem>>, vector<8x1xf32>,
    %c0_19 = arith.constant 0 : index
    %c0_20 = arith.constant 0 : index
    %30 = vector.load %arg9[%c0_19, %c0_20] : memref<8x1xf32, #tpu.memory_space<vmem>>, vector<8x1xf32>
    tpu.vector_store %arg9[%c0_19, %c0_20], %17 {strides = array<i32>} : memref<8x1xf32, #tpu.memory_space<vmem>>, vector<8x1xf32>,
    %c0_i32_21 = arith.constant 0 : i32
    %31 = arith.cmpi eq, %arg1, %c0_i32_21 : i32
    %32 = arith.extui %31 : i1 to i32
    %c0_i32_22 = arith.constant 0 : i32
    %33 = arith.cmpi ne, %32, %c0_i32_22 : i32
    scf.if %33 {
      %c0_23 = arith.constant 0 : index
      %c0_24 = arith.constant 0 : index
      %34 = vector.load %arg9[%c0_23, %c0_24] : memref<8x1xf32, #tpu.memory_space<vmem>>, vector<8x1xf32>
      %c0_25 = arith.constant 0 : index
      %c0_26 = arith.constant 0 : index
      %35 = vector.load %arg10[%c0_25, %c0_26] : memref<8x1xf32, #tpu.memory_space<vmem>>, vector<8x1xf32>
      %36 = math.log %35 : vector<8x1xf32>
      %37 = arith.addf %34, %36 : vector<8x1xf32>
      %c0_27 = arith.constant 0 : index
      %c0_28 = arith.constant 0 : index
      %38 = vector.load %arg6[%c0_27, %c0_28] : memref<8x1xf32, #tpu.memory_space<vmem>>, vector<8x1xf32>
      tpu.vector_store %arg6[%c0_27, %c0_28], %37 {strides = array<i32>} : memref<8x1xf32, #tpu.memory_space<vmem>>, vector<8x1xf32>,
    } else {
    }
    return
  }
  func.func @transform_0(%arg0: i32, %arg1: i32) -> (i32, i32) {
    %c0_i32 = arith.constant 0 : i32
    %c0_i32_0 = arith.constant 0 : i32
    return %arg0, %c0_i32 : i32, i32
  }
  func.func @transform_1(%arg0: i32, %arg1: i32) -> (i32, i32) {
    %c0_i32 = arith.constant 0 : i32
    %c0_i32_0 = arith.constant 0 : i32
    return %arg0, %c0_i32 : i32, i32
  }
  func.func @transform_2(%arg0: i32, %arg1: i32) -> (i32, i32) {
    %c0_i32 = arith.constant 0 : i32
    %c0_i32_0 = arith.constant 0 : i32
    return %c0_i32, %arg1 : i32, i32
  }
  func.func @transform_3(%arg0: i32, %arg1: i32) -> (i32, i32) {
    %c0_i32 = arith.constant 0 : i32
    %c0_i32_0 = arith.constant 0 : i32
    return %c0_i32, %arg1 : i32, i32
  }
  func.func @transform_4(%arg0: i32, %arg1: i32) -> (i32, i32) {
    %c0_i32 = arith.constant 0 : i32
    %c0_i32_0 = arith.constant 0 : i32
    return %arg0, %c0_i32 : i32, i32
  }
}

module attributes {stable_mosaic.version = 11 : i64} {
  func.func @_colmax_kernel(%arg0: i32, %arg1: i32, %arg2: memref<8x128xf32, #tpu.memory_space<vmem>>, %arg3: memref<8x128xf32, #tpu.memory_space<vmem>>, %arg4: memref<256x8xf32, #tpu.memory_space<vmem>>, %arg5: memref<1x8xf32, #tpu.memory_space<vmem>>, %arg6: memref<1x8xi32, #tpu.memory_space<vmem>>) attributes {dimension_semantics = [#tpu.dimension_semantics<parallel>, #tpu.dimension_semantics<arbitrary>], iteration_bounds = array<i64: 1, 1>, scalar_prefetch = 0 : i64, scratch_operands = 0 : i64, tpu.core_type = #tpu.core_type<tc>, window_params = [{transform_indices = @transform_0, window_bounds = array<i64: 8, 128>}, {transform_indices = @transform_1, window_bounds = array<i64: 8, 128>}, {transform_indices = @transform_2, window_bounds = array<i64: 256, 8>}, {transform_indices = @transform_3, window_bounds = array<i64: 1, 8>}, {transform_indices = @transform_4, window_bounds = array<i64: 1, 8>}]} {
    %c0 = arith.constant 0 : index
    %c0_0 = arith.constant 0 : index
    %0 = vector.load %arg2[%c0, %c0_0] : memref<8x128xf32, #tpu.memory_space<vmem>>, vector<8x128xf32>
    %c0_1 = arith.constant 0 : index
    %c0_2 = arith.constant 0 : index
    %1 = vector.load %arg3[%c0_1, %c0_2] : memref<8x128xf32, #tpu.memory_space<vmem>>, vector<8x128xf32>
    %cst = arith.constant 0.000000e+00 : f32
    %2 = vector.broadcast %cst : f32 to vector<8x128xf32>
    %3 = arith.subf %2, %1 : vector<8x128xf32>
    %4 = math.exp %3 : vector<8x128xf32>
    %5 = arith.mulf %0, %0 : vector<8x128xf32>
    %cst_3 = arith.constant dense<0.000000e+00> : vector<8xf32>
    %6 = vector.multi_reduction <add>, %5, %cst_3 [1] : vector<8x128xf32> to vector<8xf32>
    %7 = vector.shape_cast %6 : vector<8xf32> to vector<8x1xf32>
    %cst_4 = arith.constant 9.99999996E-13 : f32
    %8 = vector.broadcast %cst_4 : f32 to vector<8x1xf32>
    %9 = arith.maximumf %7, %8 : vector<8x1xf32>
    %10 = math.rsqrt %9 : vector<8x1xf32>
    %11 = vector.broadcast %10 : vector<8x1xf32> to vector<8x128xf32>
    %12 = arith.mulf %0, %11 : vector<8x128xf32>
    %13 = arith.mulf %12, %4 : vector<8x128xf32>
    %14 = tpu.concatenate %4, %13 in 1 : vector<8x128xf32>, vector<8x128xf32> -> vector<8x256xf32>
    %15 = arith.mulf %12, %13 : vector<8x128xf32>
    %cst_5 = arith.constant dense<0.000000e+00> : vector<8xf32>
    %16 = vector.multi_reduction <add>, %15, %cst_5 [1] : vector<8x128xf32> to vector<8xf32>
    %17 = vector.shape_cast %16 : vector<8xf32> to vector<8x1xf32>
    %cst_6 = arith.constant -5.000000e-01 : f32
    %18 = vector.broadcast %cst_6 : f32 to vector<8x1xf32>
    %19 = arith.mulf %18, %17 : vector<8x1xf32>
    %c0_7 = arith.constant 0 : index
    %c0_8 = arith.constant 0 : index
    %20 = vector.load %arg4[%c0_7, %c0_8] : memref<256x8xf32, #tpu.memory_space<vmem>>, vector<256x8xf32>
    %cst_9 = arith.constant dense<0.000000e+00> : vector<8x8xf32>
    %21 = tpu.matmul %14, %20, %cst_9 {dimension_numbers = #tpu.dot_dimension_numbers<[1], [0], [0], [1], [0, 0, 1, 1], [], []>} : vector<8x256xf32>, vector<256x8xf32>, vector<8x8xf32> -> vector<8x8xf32>
    %22 = vector.broadcast %19 : vector<8x1xf32> to vector<8x8xf32>
    %23 = arith.addf %21, %22 : vector<8x8xf32>
    %cst_10 = arith.constant dense<0xFF800000> : vector<8xf32>
    %24 = vector.multi_reduction <maximumf>, %23, %cst_10 [0] : vector<8x8xf32> to vector<8xf32>
    %25 = vector.shape_cast %24 : vector<8xf32> to vector<1x8xf32>
    %c0_i32 = arith.constant 0 : i32
    %26 = arith.cmpi eq, %arg1, %c0_i32 : i32
    %27 = arith.extui %26 : i1 to i32
    %c0_i32_11 = arith.constant 0 : i32
    %28 = arith.cmpi ne, %27, %c0_i32_11 : i32
    scf.if %28 {
      %cst_21 = arith.constant 0xFF800000 : f32
      %46 = vector.broadcast %cst_21 : f32 to vector<1x8xf32>
      %c0_22 = arith.constant 0 : index
      %c0_23 = arith.constant 0 : index
      %47 = vector.load %arg5[%c0_22, %c0_23] : memref<1x8xf32, #tpu.memory_space<vmem>>, vector<1x8xf32>
      tpu.vector_store %arg5[%c0_22, %c0_23], %46 {strides = array<i32>} : memref<1x8xf32, #tpu.memory_space<vmem>>, vector<1x8xf32>,
      %c0_i32_24 = arith.constant 0 : i32
      %48 = vector.broadcast %c0_i32_24 : i32 to vector<1x8xi32>
      %c0_25 = arith.constant 0 : index
      %c0_26 = arith.constant 0 : index
      %49 = vector.load %arg6[%c0_25, %c0_26] : memref<1x8xi32, #tpu.memory_space<vmem>>, vector<1x8xi32>
      tpu.vector_store %arg6[%c0_25, %c0_26], %48 {strides = array<i32>} : memref<1x8xi32, #tpu.memory_space<vmem>>, vector<1x8xi32>,
    } else {
    }
    %c0_12 = arith.constant 0 : index
    %c0_13 = arith.constant 0 : index
    %29 = vector.load %arg5[%c0_12, %c0_13] : memref<1x8xf32, #tpu.memory_space<vmem>>, vector<1x8xf32>
    %c8_i32 = arith.constant 8 : i32
    %30 = arith.muli %arg1, %c8_i32 : i32
    %31 = tpu.iota {dimensions = array<i32: 0>} : vector<8x8xi32>
    %32 = vector.broadcast %30 : i32 to vector<8x8xi32>
    %33 = arith.addi %32, %31 : vector<8x8xi32>
    %34 = vector.broadcast %25 : vector<1x8xf32> to vector<8x8xf32>
    %35 = arith.cmpf oge, %23, %34 : vector<8x8xf32>
    %c1073741824_i32 = arith.constant 1073741824 : i32
    %36 = vector.broadcast %c1073741824_i32 : i32 to vector<8x8xi32>
    %37 = arith.select %35, %33, %36 : vector<8x8xi1>, vector<8x8xi32>
    %cst_14 = arith.constant dense<2147483647> : vector<8xi32>
    %38 = vector.multi_reduction <minsi>, %37, %cst_14 [0] : vector<8x8xi32> to vector<8xi32>
    %39 = vector.shape_cast %38 : vector<8xi32> to vector<1x8xi32>
    %40 = arith.cmpf ogt, %25, %29 : vector<1x8xf32>
    %c0_15 = arith.constant 0 : index
    %c0_16 = arith.constant 0 : index
    %41 = vector.load %arg6[%c0_15, %c0_16] : memref<1x8xi32, #tpu.memory_space<vmem>>, vector<1x8xi32>
    %42 = arith.select %40, %39, %41 : vector<1x8xi1>, vector<1x8xi32>
    %c0_17 = arith.constant 0 : index
    %c0_18 = arith.constant 0 : index
    %43 = vector.load %arg6[%c0_17, %c0_18] : memref<1x8xi32, #tpu.memory_space<vmem>>, vector<1x8xi32>
    tpu.vector_store %arg6[%c0_17, %c0_18], %42 {strides = array<i32>} : memref<1x8xi32, #tpu.memory_space<vmem>>, vector<1x8xi32>,
    %44 = arith.maximumf %29, %25 : vector<1x8xf32>
    %c0_19 = arith.constant 0 : index
    %c0_20 = arith.constant 0 : index
    %45 = vector.load %arg5[%c0_19, %c0_20] : memref<1x8xf32, #tpu.memory_space<vmem>>, vector<1x8xf32>
    tpu.vector_store %arg5[%c0_19, %c0_20], %44 {strides = array<i32>} : memref<1x8xf32, #tpu.memory_space<vmem>>, vector<1x8xf32>,
    return
  }
  func.func @transform_0(%arg0: i32, %arg1: i32) -> (i32, i32) {
    %c0_i32 = arith.constant 0 : i32
    %c0_i32_0 = arith.constant 0 : i32
    return %arg1, %c0_i32 : i32, i32
  }
  func.func @transform_1(%arg0: i32, %arg1: i32) -> (i32, i32) {
    %c0_i32 = arith.constant 0 : i32
    %c0_i32_0 = arith.constant 0 : i32
    return %arg1, %c0_i32 : i32, i32
  }
  func.func @transform_2(%arg0: i32, %arg1: i32) -> (i32, i32) {
    %c0_i32 = arith.constant 0 : i32
    %c0_i32_0 = arith.constant 0 : i32
    return %c0_i32, %arg0 : i32, i32
  }
  func.func @transform_3(%arg0: i32, %arg1: i32) -> (i32, i32) {
    %c0_i32 = arith.constant 0 : i32
    %c0_i32_0 = arith.constant 0 : i32
    return %c0_i32, %arg0 : i32, i32
  }
  func.func @transform_4(%arg0: i32, %arg1: i32) -> (i32, i32) {
    %c0_i32 = arith.constant 0 : i32
    %c0_i32_0 = arith.constant 0 : i32
    return %c0_i32, %arg0 : i32, i32
  }
}

</mosaic_0001>

<llo_original>
// kernel: mpc_retrieval_loss.2
$region0: #{mpc_retrieval_loss.2}
  #allocation0 [shape = 'u32[]', space=smem, size = 0x4, offset = 0x4, fixed_abs, tag = 'smem constant byte address 0x4 - core index']
  #allocation1 [shape = 'u32[144,128]{1,0:T(1,128)}', space=vmem, size = 0x12000, scoped, tag = 'internal scratch']
  %s0 = inlined_call_operand.vmem [shape: f32[8,128], index: 0, kind: input, shape index: {}]
  %s1 = inlined_call_operand.vmem [shape: f32[8,128], index: 1, kind: input, shape index: {}]
  %s2 = inlined_call_operand.vmem [shape: f32[256,8], index: 2, kind: input, shape index: {}]
  %s3 = inlined_call_operand.vmem [shape: f32[1,8], index: 3, kind: output, shape index: {0}]
  %s4 = inlined_call_operand.vmem [shape: s32[1,8], index: 4, kind: output, shape index: {1}]
  %5 = xla_tuple %s3, %s4
  %s6 = sld [smem:[#allocation0]]
  $region34: #{mpc_retrieval_loss.2} parent=0
    _
  %s8 = ssub.s32 1, %s6
  %s9 = scalar_select 0, %s8, %s6
  // Predicated region
  $region2: #{mpc_retrieval_loss.2} parent=0 // pred_check
    _
  $region3: #{mpc_retrieval_loss.2} parent=0 // pred_check_branch
    %11 = sbr.rel (0) target = $region5
  $region4: #{mpc_retrieval_loss.2} parent=0 // pred_region
    _
  $region5: #{mpc_retrieval_loss.2} parent=0 // pred_fallthru
    _
  // Predicated region
  $region6: #{mpc_retrieval_loss.2} parent=0 // pred_check
    _
  $region7: #{mpc_retrieval_loss.2} parent=0 // pred_check_branch
    %13 = sbr.rel (0) target = $region9
  $region8: #{mpc_retrieval_loss.2} parent=0 // pred_region
    _
  $region9: #{mpc_retrieval_loss.2} parent=0 // pred_fallthru
    _
  // Predicated region
  $region10: #{mpc_retrieval_loss.2} parent=0 // pred_check
    _
  $region11: #{mpc_retrieval_loss.2} parent=0 // pred_check_branch
    %15 = sbr.rel (0) target = $region13
  $region12: #{mpc_retrieval_loss.2} parent=0 // pred_region
    _
  $region13: #{mpc_retrieval_loss.2} parent=0 // pred_fallthru
    _
  %v16 = vld [vmem:[%s0] sm:$0xff]
  %v17 = vld [vmem:[%s1] sm:$0xff]
  %v18 = vsub.f32 0.0, %v17
  %v19 = vmul.f32 %v18, 1.442695
  %v20 = vpow.pop %v19
  %v21 = vmul.f32 %v16, %v16
  %22 = vadd.xlane.f32.xlu0 %v21
  %v23 = vpop.xlane.xlu0 %22
  %v24 = vmax.f32 %v23, 1e-12
  %v25 = vrsqrt.pop %v24
  %v26 = vmul.f32 %v16, %v25
  %v27 = vmul.f32 %v26, %v20
  %v28 = vmul.f32 %v26, %v27
  %29 = vadd.xlane.f32.xlu0 %v28
  %v30 = vpop.xlane.xlu0 %29
  %v31 = vmul.f32 %v30, -0.5
  %v32 = vld [vmem:[%s2] sm:$0xff]
  %v33 = vld [vmem:[%s2 + $0x8] sm:$0xff]
  %v34 = vld [vmem:[%s2 + $0x10] sm:$0xff]
  %v35 = vld [vmem:[%s2 + $0x18] sm:$0xff]
  %v36 = vld [vmem:[%s2 + $0x20] sm:$0xff]
  %v37 = vld [vmem:[%s2 + $0x28] sm:$0xff]
  %v38 = vld [vmem:[%s2 + $0x30] sm:$0xff]
  %v39 = vld [vmem:[%s2 + $0x38] sm:$0xff]
  %v40 = vld [vmem:[%s2 + $0x40] sm:$0xff]
  %v41 = vld [vmem:[%s2 + $0x48] sm:$0xff]
  %v42 = vld [vmem:[%s2 + $0x50] sm:$0xff]
  %v43 = vld [vmem:[%s2 + $0x58] sm:$0xff]
  %v44 = vld [vmem:[%s2 + $0x60] sm:$0xff]
  %v45 = vld [vmem:[%s2 + $0x68] sm:$0xff]
  %v46 = vld [vmem:[%s2 + $0x70] sm:$0xff]
  %v47 = vld [vmem:[%s2 + $0x78] sm:$0xff]
  %v48 = vld [vmem:[%s2 + $0x80] sm:$0xff]
  %v49 = vld [vmem:[%s2 + $0x88] sm:$0xff]
  %v50 = vld [vmem:[%s2 + $0x90] sm:$0xff]
  %v51 = vld [vmem:[%s2 + $0x98] sm:$0xff]
  %v52 = vld [vmem:[%s2 + $0xa0] sm:$0xff]
  %v53 = vld [vmem:[%s2 + $0xa8] sm:$0xff]
  %v54 = vld [vmem:[%s2 + $0xb0] sm:$0xff]
  %v55 = vld [vmem:[%s2 + $0xb8] sm:$0xff]
  %v56 = vld [vmem:[%s2 + $0xc0] sm:$0xff]
  %v57 = vld [vmem:[%s2 + $0xc8] sm:$0xff]
  %v58 = vld [vmem:[%s2 + $0xd0] sm:$0xff]
  %v59 = vld [vmem:[%s2 + $0xd8] sm:$0xff]
  %v60 = vld [vmem:[%s2 + $0xe0] sm:$0xff]
  %v61 = vld [vmem:[%s2 + $0xe8] sm:$0xff]
  %v62 = vld [vmem:[%s2 + $0xf0] sm:$0xff]
  %v63 = vld [vmem:[%s2 + $0xf8] sm:$0xff]
  %64 = vmatprep.subr.mxu0 0.0
  %65 = vmatpush1.msra.mxu0 %v32
  %66 = vmatprep.subr.mxu0 0.0
  %67 = vmatpush1.msra.mxu0 %v33
  %68 = vmatprep.subr.mxu0 0.0
  %69 = vmatpush1.msra.mxu0 %v34
  %70 = vmatprep.subr.mxu0 0.0
  %71 = vmatpush1.msra.mxu0 %v35
  %72 = vmatprep.subr.mxu0 0.0
  %73 = vmatpush1.msra.mxu0 %v36
  %74 = vmatprep.subr.mxu0 0.0
  %75 = vmatpush1.msra.mxu0 %v37
  %76 = vmatprep.subr.mxu0 0.0
  %77 = vmatpush1.msra.mxu0 %v38
  %78 = vmatprep.subr.mxu0 0.0
  %79 = vmatpush1.msra.mxu0 %v39
  %80 = vmatprep.subr.mxu0 0.0
  %81 = vmatpush1.msra.mxu0 %v40
  %82 = vmatprep.subr.mxu0 0.0
  %83 = vmatpush1.msra.mxu0 %v41
  %84 = vmatprep.subr.mxu0 0.0
  %85 = vmatpush1.msra.mxu0 %v42
  %86 = vmatprep.subr.mxu0 0.0
  %87 = vmatpush1.msra.mxu0 %v43
  %88 = vmatprep.subr.mxu0 0.0
  %89 = vmatpush1.msra.mxu0 %v44
  %90 = vmatprep.subr.mxu0 0.0
  %91 = vmatpush1.msra.mxu0 %v45
  %92 = vmatprep.subr.mxu0 0.0
  %93 = vmatpush1.msra.mxu0 %v46
  %94 = vmatprep.subr.mxu0 0.0
  %95 = vmatpush1.msra.mxu0 %v47
  %96 = vmatprep.subr.mxu0 0.0
  %97 = vmatpush1.msra.mxu0 %v48
  %98 = vmatprep.subr.mxu0 0.0
  %99 = vmatpush1.msra.mxu0 %v49
  %100 = vmatprep.subr.mxu0 0.0
  %101 = vmatpush1.msra.mxu0 %v50
  %102 = vmatprep.subr.mxu0 0.0
  %103 = vmatpush1.msra.mxu0 %v51
  %104 = vmatprep.subr.mxu0 0.0
  %105 = vmatpush1.msra.mxu0 %v52
  %106 = vmatprep.subr.mxu0 0.0
  %107 = vmatpush1.msra.mxu0 %v53
  %108 = vmatprep.subr.mxu0 0.0
  %109 = vmatpush1.msra.mxu0 %v54
  %110 = vmatprep.subr.mxu0 0.0
  %111 = vmatpush1.msra.mxu0 %v55
  %112 = vmatprep.subr.mxu0 0.0
  %113 = vmatpush1.msra.mxu0 %v56
  %114 = vmatprep.subr.mxu0 0.0
  %115 = vmatpush1.msra.mxu0 %v57
  %116 = vmatprep.subr.mxu0 0.0
  %117 = vmatpush1.msra.mxu0 %v58
  %118 = vmatprep.subr.mxu0 0.0
  %119 = vmatpush1.msra.mxu0 %v59
  %120 = vmatprep.subr.mxu0 0.0
  %121 = vmatpush1.msra.mxu0 %v60
  %122 = vmatprep.subr.mxu0 0.0
  %123 = vmatpush1.msra.mxu0 %v61
  %124 = vmatprep.subr.mxu0 0.0
  %125 = vmatpush1.msra.mxu0 %v62
  %126 = vmatprep.subr.mxu0 0.0
  %127 = vmatpush1.msra.mxu0 %v63
  %128 = vmatprep.mubr.f32.mxu0 %v27
  %129 = vmatmul.mubr.f32.gmra.mrb[0].mxu0 %v20
  %v130 = vpop.f32.mrb[0].mxu0
  %v131 = vadd.f32 %v31, %v130
  %v132 = vpop.f32.mrb[0].mxu0
  %133 = vdwg.mxu0
  %vm134 = vcmask 64512
  %v135 = vsel %vm134, %v131, -inf
  %v136 = vrot.slane %v135, 4
  %v137 = vmax.f32 %v135, %v136
  %v138 = vrot.slane %v137, 2
  %v139 = vmax.f32 %v137, %v138
  %v140 = vrot.slane %v139, 1
  %v141 = vmax.f32 %v139, %v140
  %p142 = scmp.eq.s32.totalorder 0, 0
  // Predicated region
  $region14: #{mpc_retrieval_loss.2} parent=0 // pred_check
    %p143 = pneg %p142
  $region15: #{mpc_retrieval_loss.2} parent=0 // pred_check_branch
    %145 = sbr.rel (%p143) target = $region17
  $region16: #{mpc_retrieval_loss.2} parent=0 // pred_region
    %vm146 = vcmask 57344
    %147 = vst.msk [vmem:[%s3] sm:$0x1] %vm146, -inf
    %148 = vst.msk [vmem:[%s4] sm:$0x1] %vm146, 0
  $region17: #{mpc_retrieval_loss.2} parent=0 // pred_fallthru
    _
  %v149 = vld [vmem:[%s3] sm:$0x1]
  %s150 = smul.u32 0, 8
  %v151 = vlaneseq
  %v152 = vshrl.u32 %v151, 7
  %v153 = vstv %s150
  %v154 = vadd.s32 %v153, %v152
  %vm155 = vcmp.ge.f32.partialorder %v131, %v141
  %v156 = vsel %vm155, %v154, 1073741824
  %v157 = vsel %vm134, %v156, 2147483647
  %v158 = vrot.slane %v157, 4
  %vm159 = vcmp.lt.s32.totalorder %v157, %v158
  %v160 = vsel %vm159, %v157, %v158
  %v161 = vrot.slane %v160, 2
  %vm162 = vcmp.lt.s32.totalorder %v160, %v161
  %v163 = vsel %vm162, %v160, %v161
  %v164 = vrot.slane %v163, 1
  %vm165 = vcmp.lt.s32.totalorder %v163, %v164
  %v166 = vsel %vm165, %v163, %v164
  %vm167 = vcmp.gt.f32.partialorder %v141, %v149
  %v168 = vld [vmem:[%s4] sm:$0x1]
  %v169 = vsel %vm167, %v166, %v168
  %vm170 = vcmask 57344
  %171 = vst.msk [vmem:[%s4] sm:$0x1] %vm170, %v169
  %v172 = vmax.f32 %v149, %v141
  %173 = vst.msk [vmem:[%s3] sm:$0x1] %vm170, %v172
  // Predicated region
  $region18: #{mpc_retrieval_loss.2} parent=0 // pred_check
    _
  $region19: #{mpc_retrieval_loss.2} parent=0 // pred_check_branch
    %175 = sbr.rel (0) target = $region21
  $region20: #{mpc_retrieval_loss.2} parent=0 // pred_region
    _
  $region21: #{mpc_retrieval_loss.2} parent=0 // pred_fallthru
    _
  // Predicated region
  $region22: #{mpc_retrieval_loss.2} parent=0 // pred_check
    _
  $region23: #{mpc_retrieval_loss.2} parent=0 // pred_check_branch
    %177 = sbr.rel (0) target = $region25
  $region24: #{mpc_retrieval_loss.2} parent=0 // pred_region
    _
  $region25: #{mpc_retrieval_loss.2} parent=0 // pred_fallthru
    _
  // Predicated region
  $region26: #{mpc_retrieval_loss.2} parent=0 // pred_check
    _
  $region27: #{mpc_retrieval_loss.2} parent=0 // pred_check_branch
    %179 = sbr.rel (0) target = $region29
  $region28: #{mpc_retrieval_loss.2} parent=0 // pred_region
    _
  $region29: #{mpc_retrieval_loss.2} parent=0 // pred_fallthru
    _
  // Predicated region
  $region30: #{mpc_retrieval_loss.2} parent=0 // pred_check
    _
  $region31: #{mpc_retrieval_loss.2} parent=0 // pred_check_branch
    %181 = sbr.rel (0) target = $region33
  $region32: #{mpc_retrieval_loss.2} parent=0 // pred_region
    _
  $region33: #{mpc_retrieval_loss.2} parent=0 // pred_fallthru
    _

// kernel: mpc_retrieval_loss.3
$region0: #{mpc_retrieval_loss.3}
  #allocation0 [shape = 'u32[]', space=smem, size = 0x4, offset = 0x4, fixed_abs, tag = 'smem constant byte address 0x4 - core index']
  #allocation1 [shape = 'u32[144,128]{1,0:T(1,128)}', space=vmem, size = 0x12000, scoped, tag = 'internal scratch']
  #allocation2 [shape = 'f32[8,256]{1,0:T(8,128)}', space=vmem, size = 0x2000, scoped, tag = 'scratch operand']
  #allocation3 [shape = 'f32[8,1]{1,0:T(8,128)}', space=vmem, size = 0x1000, scoped, tag = 'scratch operand']
  #allocation4 [shape = 'f32[8,1]{1,0:T(8,128)}', space=vmem, size = 0x1000, scoped, tag = 'scratch operand']
  #allocation5 [shape = 'f32[8,1]{1,0:T(8,128)}', space=vmem, size = 0x1000, scoped, tag = 'scratch operand']
  %s0 = inlined_call_operand.vmem [shape: f32[8,128], index: 0, kind: input, shape index: {}]
  %s1 = inlined_call_operand.vmem [shape: f32[8,128], index: 1, kind: input, shape index: {}]
  %s2 = inlined_call_operand.vmem [shape: f32[256,8], index: 2, kind: input, shape index: {}]
  %s3 = inlined_call_operand.vmem [shape: f32[1,8], index: 3, kind: input, shape index: {}]
  %s4 = inlined_call_operand.vmem [shape: f32[8,1], index: 4, kind: output, shape index: {}]
  %s5 = sld [smem:[#allocation0]]
  $region34: #{mpc_retrieval_loss.3} parent=0
    _
  %s7 = ssub.s32 1, %s5
  %s8 = scalar_select 0, %s7, %s5
  // Predicated region
  $region2: #{mpc_retrieval_loss.3} parent=0 // pred_check
    _
  $region3: #{mpc_retrieval_loss.3} parent=0 // pred_check_branch
    %10 = sbr.rel (0) target = $region5
  $region4: #{mpc_retrieval_loss.3} parent=0 // pred_region
    _
  $region5: #{mpc_retrieval_loss.3} parent=0 // pred_fallthru
    _
  // Predicated region
  $region6: #{mpc_retrieval_loss.3} parent=0 // pred_check
    _
  $region7: #{mpc_retrieval_loss.3} parent=0 // pred_check_branch
    %12 = sbr.rel (0) target = $region9
  $region8: #{mpc_retrieval_loss.3} parent=0 // pred_region
    _
  $region9: #{mpc_retrieval_loss.3} parent=0 // pred_fallthru
    _
  // Predicated region
  $region10: #{mpc_retrieval_loss.3} parent=0 // pred_check
    _
  $region11: #{mpc_retrieval_loss.3} parent=0 // pred_check_branch
    %14 = sbr.rel (0) target = $region13
  $region12: #{mpc_retrieval_loss.3} parent=0 // pred_region
    _
  $region13: #{mpc_retrieval_loss.3} parent=0 // pred_fallthru
    _
  // Predicated region
  $region14: #{mpc_retrieval_loss.3} parent=0 // pred_check
    _
  $region15: #{mpc_retrieval_loss.3} parent=0 // pred_check_branch
    %16 = sbr.rel (0) target = $region17
  $region16: #{mpc_retrieval_loss.3} parent=0 // pred_region
    _
  $region17: #{mpc_retrieval_loss.3} parent=0 // pred_fallthru
    _
  %p17 = scmp.eq.s32.totalorder 0, 0
  // Predicated region
  $region18: #{mpc_retrieval_loss.3} parent=0 // pred_check
    %p18 = pneg %p17
  $region19: #{mpc_retrieval_loss.3} parent=0 // pred_check_branch
    %20 = sbr.rel (%p18) target = $region21
  $region20: #{mpc_retrieval_loss.3} parent=0 // pred_region
    %v21 = vld [vmem:[%s0] sm:$0xff]
    %v22 = vld [vmem:[%s1] sm:$0xff]
    %v23 = vsub.f32 0.0, %v22
    %v24 = vmul.f32 %v23, 1.442695
    %v25 = vpow.pop %v24
    %v26 = vmul.f32 %v21, %v21
    %27 = vadd.xlane.f32.xlu0 %v26
    %v28 = vpop.xlane.xlu0 %27
    %v29 = vmax.f32 %v28, 1e-12
    %v30 = vrsqrt.pop %v29
    %v31 = vmul.f32 %v21, %v30
    %v32 = vmul.f32 %v31, %v25
    %v33 = vmul.f32 %v31, %v32
    %34 = vadd.xlane.f32.xlu0 %v33
    %v35 = vpop.xlane.xlu0 %34
    %v36 = vmul.f32 %v35, -0.5
    %37 = vst [vmem:[#allocation2] sm:$0xff] %v25
    %38 = vst [vmem:[#allocation2 + $0x8] sm:$0xff] %v32
    %vm39 = vcmask 7168
    %40 = vst.msk [vmem:[#allocation3] sm:$0xff] %vm39, %v36
    %41 = vst.msk [vmem:[#allocation4] sm:$0xff] %vm39, -inf
    %42 = vst.msk [vmem:[#allocation5] sm:$0xff] %vm39, 0.0
  $region21: #{mpc_retrieval_loss.3} parent=0 // pred_fallthru
    _
  %v43 = vld [vmem:[#allocation2] sm:$0xff]
  %v44 = vld [vmem:[#allocation2 + $0x8] sm:$0xff]
  %v45 = vld [vmem:[%s2] sm:$0xff]
  %v46 = vld [vmem:[%s2 + $0x8] sm:$0xff]
  %v47 = vld [vmem:[%s2 + $0x10] sm:$0xff]
  %v48 = vld [vmem:[%s2 + $0x18] sm:$0xff]
  %v49 = vld [vmem:[%s2 + $0x20] sm:$0xff]
  %v50 = vld [vmem:[%s2 + $0x28] sm:$0xff]
  %v51 = vld [vmem:[%s2 + $0x30] sm:$0xff]
  %v52 = vld [vmem:[%s2 + $0x38] sm:$0xff]
  %v53 = vld [vmem:[%s2 + $0x40] sm:$0xff]
  %v54 = vld [vmem:[%s2 + $0x48] sm:$0xff]
  %v55 = vld [vmem:[%s2 + $0x50] sm:$0xff]
  %v56 = vld [vmem:[%s2 + $0x58] sm:$0xff]
  %v57 = vld [vmem:[%s2 + $0x60] sm:$0xff]
  %v58 = vld [vmem:[%s2 + $0x68] sm:$0xff]
  %v59 = vld [vmem:[%s2 + $0x70] sm:$0xff]
  %v60 = vld [vmem:[%s2 + $0x78] sm:$0xff]
  %v61 = vld [vmem:[%s2 + $0x80] sm:$0xff]
  %v62 = vld [vmem:[%s2 + $0x88] sm:$0xff]
  %v63 = vld [vmem:[%s2 + $0x90] sm:$0xff]
  %v64 = vld [vmem:[%s2 + $0x98] sm:$0xff]
  %v65 = vld [vmem:[%s2 + $0xa0] sm:$0xff]
  %v66 = vld [vmem:[%s2 + $0xa8] sm:$0xff]
  %v67 = vld [vmem:[%s2 + $0xb0] sm:$0xff]
  %v68 = vld [vmem:[%s2 + $0xb8] sm:$0xff]
  %v69 = vld [vmem:[%s2 + $0xc0] sm:$0xff]
  %v70 = vld [vmem:[%s2 + $0xc8] sm:$0xff]
  %v71 = vld [vmem:[%s2 + $0xd0] sm:$0xff]
  %v72 = vld [vmem:[%s2 + $0xd8] sm:$0xff]
  %v73 = vld [vmem:[%s2 + $0xe0] sm:$0xff]
  %v74 = vld [vmem:[%s2 + $0xe8] sm:$0xff]
  %v75 = vld [vmem:[%s2 + $0xf0] sm:$0xff]
  %v76 = vld [vmem:[%s2 + $0xf8] sm:$0xff]
  %v77 = vld [vmem:[#allocation3] sm:$0xff]
  %79 = vset.pattern.permute.xlu0 0
  %80 = vperm.xlu0 %79, %v77
  %v81 = vpop.permute.xlu0 %80
  %83 = vmatprep.subr.mxu0 0.0
  %84 = vmatpush1.msra.mxu0 %v45
  %85 = vmatprep.subr.mxu0 0.0
  %86 = vmatpush1.msra.mxu0 %v46
  %87 = vmatprep.subr.mxu0 0.0
  %88 = vmatpush1.msra.mxu0 %v47
  %89 = vmatprep.subr.mxu0 0.0
  %90 = vmatpush1.msra.mxu0 %v48
  %91 = vmatprep.subr.mxu0 0.0
  %92 = vmatpush1.msra.mxu0 %v49
  %93 = vmatprep.subr.mxu0 0.0
  %94 = vmatpush1.msra.mxu0 %v50
  %95 = vmatprep.subr.mxu0 0.0
  %96 = vmatpush1.msra.mxu0 %v51
  %97 = vmatprep.subr.mxu0 0.0
  %98 = vmatpush1.msra.mxu0 %v52
  %99 = vmatprep.subr.mxu0 0.0
  %100 = vmatpush1.msra.mxu0 %v53
  %101 = vmatprep.subr.mxu0 0.0
  %102 = vmatpush1.msra.mxu0 %v54
  %103 = vmatprep.subr.mxu0 0.0
  %104 = vmatpush1.msra.mxu0 %v55
  %105 = vmatprep.subr.mxu0 0.0
  %106 = vmatpush1.msra.mxu0 %v56
  %107 = vmatprep.subr.mxu0 0.0
  %108 = vmatpush1.msra.mxu0 %v57
  %109 = vmatprep.subr.mxu0 0.0
  %110 = vmatpush1.msra.mxu0 %v58
  %111 = vmatprep.subr.mxu0 0.0
  %112 = vmatpush1.msra.mxu0 %v59
  %113 = vmatprep.subr.mxu0 0.0
  %114 = vmatpush1.msra.mxu0 %v60
  %115 = vmatprep.subr.mxu0 0.0
  %116 = vmatpush1.msra.mxu0 %v61
  %117 = vmatprep.subr.mxu0 0.0
  %118 = vmatpush1.msra.mxu0 %v62
  %119 = vmatprep.subr.mxu0 0.0
  %120 = vmatpush1.msra.mxu0 %v63
  %121 = vmatprep.subr.mxu0 0.0
  %122 = vmatpush1.msra.mxu0 %v64
  %123 = vmatprep.subr.mxu0 0.0
  %124 = vmatpush1.msra.mxu0 %v65
  %125 = vmatprep.subr.mxu0 0.0
  %126 = vmatpush1.msra.mxu0 %v66
  %127 = vmatprep.subr.mxu0 0.0
  %128 = vmatpush1.msra.mxu0 %v67
  %129 = vmatprep.subr.mxu0 0.0
  %130 = vmatpush1.msra.mxu0 %v68
  %131 = vmatprep.subr.mxu0 0.0
  %132 = vmatpush1.msra.mxu0 %v69
  %133 = vmatprep.subr.mxu0 0.0
  %134 = vmatpush1.msra.mxu0 %v70
  %135 = vmatprep.subr.mxu0 0.0
  %136 = vmatpush1.msra.mxu0 %v71
  %137 = vmatprep.subr.mxu0 0.0
  %138 = vmatpush1.msra.mxu0 %v72
  %139 = vmatprep.subr.mxu0 0.0
  %140 = vmatpush1.msra.mxu0 %v73
  %141 = vmatprep.subr.mxu0 0.0
  %142 = vmatpush1.msra.mxu0 %v74
  %143 = vmatprep.subr.mxu0 0.0
  %144 = vmatpush1.msra.mxu0 %v75
  %145 = vmatprep.subr.mxu0 0.0
  %146 = vmatpush1.msra.mxu0 %v76
  %147 = vmatprep.mubr.f32.mxu0 %v44
  %148 = vmatmul.mubr.f32.gmra.mrb[0].mxu0 %v43
  %v149 = vpop.f32.mrb[0].mxu0
  %v150 = vadd.f32 %v81, %v149
  %v151 = vpop.f32.mrb[0].mxu0
  %152 = vdwg.mxu0
  %v153 = vld [vmem:[%s3] sm:$0x1]
  %v155 = vlaneseq
  %v156 = vshrl.u32 %v155, 7
  %v157 = vsub.s32 0, %v156
  %v158 = vrot.slane %v153, %v157
  %v160 = vsub.f32 %v150, %v158
  %v161 = vmul.f32 %v160, 10.0
  %vm162 = vcmask 64512
  %v163 = vsel %vm162, %v161, -inf
  %164 = vmax.xlane.f32.xlu0 %v163
  %v165 = vpop.xlane.xlu0 %164
  %v166 = vld [vmem:[#allocation4] sm:$0xff]
  %v167 = vmax.f32 %v166, %v165
  %v168 = vsub.f32 %v166, %v167
  %v169 = vmul.f32 %v168, 1.442695
  %v170 = vpow.pop %v169
  %v171 = vld [vmem:[#allocation5] sm:$0xff]
  %v172 = vmul.f32 %v170, %v171
  %174 = vset.pattern.permute.xlu0 0
  %175 = vperm.xlu0 %174, %v167
  %v176 = vpop.permute.xlu0 %175
  %v178 = vsub.f32 %v161, %v176
  %v179 = vmul.f32 %v178, 1.442695
  %v180 = vpow.pop %v179
  %v181 = vsel %vm162, %v180, 0.0
  %182 = vadd.xlane.f32.xlu0 %v181
  %v183 = vpop.xlane.xlu0 %182
  %v184 = vadd.f32 %v172, %v183
  %vm185 = vcmask 7168
  %186 = vst.msk [vmem:[#allocation5] sm:$0xff] %vm185, %v184
  %187 = vst.msk [vmem:[#allocation4] sm:$0xff] %vm185, %v167
  // Predicated region
  $region22: #{mpc_retrieval_loss.3} parent=0 // pred_check
    %p188 = pneg %p17
  $region23: #{mpc_retrieval_loss.3} parent=0 // pred_check_branch
    %190 = sbr.rel (%p188) target = $region25
  $region24: #{mpc_retrieval_loss.3} parent=0 // pred_region
    %v191 = vld [vmem:[#allocation4] sm:$0xff]
    %v192 = vld [vmem:[#allocation5] sm:$0xff]
    %v193 = vlog2.pop %v192
    %v194 = vmul.f32 %v193, 0.6931472
    %v195 = vadd.f32 %v191, %v194
    %196 = vst.msk [vmem:[%s4] sm:$0xff] %vm185, %v195
  $region25: #{mpc_retrieval_loss.3} parent=0 // pred_fallthru
    _
  // Predicated region
  $region26: #{mpc_retrieval_loss.3} parent=0 // pred_check
    _
  $region27: #{mpc_retrieval_loss.3} parent=0 // pred_check_branch
    %198 = sbr.rel (0) target = $region29
  $region28: #{mpc_retrieval_loss.3} parent=0 // pred_region
    _
  $region29: #{mpc_retrieval_loss.3} parent=0 // pred_fallthru
    _
  // Predicated region
  $region30: #{mpc_retrieval_loss.3} parent=0 // pred_check
    _
  $region31: #{mpc_retrieval_loss.3} parent=0 // pred_check_branch
    %200 = sbr.rel (0) target = $region33
  $region32: #{mpc_retrieval_loss.3} parent=0 // pred_region
    _
  $region33: #{mpc_retrieval_loss.3} parent=0 // pred_fallthru
    _

</llo_original>
